<compile_context>
chip_gen: v6e
topology: v6e:2x2x1
jax: 0.10.0
libtpu: 0.0.40
codegen_flags: <defaults>
</compile_context>

<pallas_src>
import functools

import jax
import jax.numpy as jnp
from jax import lax
from jax.experimental import pallas as pl
from jax.experimental.pallas import tpu as pltpu


def _round_up(x, m):
    return -(-x // m) * m


def _choose_tiles(b, n):
    """Pick (batch tile tb, row chunk sb, column block cn).

    tb: rows per grid step (amortizes the ~0.35us/step cost; capped at 128 so
        moderate batches still split into >=2 tiles for megacore sharding).
    sb: rows per inner chunk; largest multiple-of-8 divisor of tb (<=64) such
        that ~4 live (sb, n, cn) f32 slabs stay under ~16 MiB.
    cn: lane width of one outer-product block; full row unless N is large.
    """
    cn = n if (n <= 256 or n % 128 != 0) else 128
    if b <= 8:
        return b, b, cn
    tb = min(128, _round_up(b, 8))
    slab_budget = 16 * 1024 * 1024
    sb = 8
    for cand in range(64, 8, -8):
        if tb % cand == 0 and 4 * cand * n * cn * 4 <= slab_budget:
            sb = cand
            break
    return tb, sb, cn


def _mi_loss_kernel(p1_ref, p2_ref, out_ref, *, tb, sb, cn, b):
    """One grid step: (tb, N) batch tile -> one lane-dense (1, 128) partial."""
    t = pl.program_id(0)
    n = p1_ref.shape[1]
    n_chunks = tb // sb
    n_cols = n // cn
    eps = jnp.float32(jnp.finfo(jnp.float32).eps)   # == torch.finfo(float32).eps
    inv_b = jnp.float32(1.0 / b)

    def mi_h_block(p1c, p2b, inv_z):
        # `outer` is consumed immediately; peak of ~3 live (sb, n, cn) slabs.
        outer = p1c[:, :, None] * p2b[:, None, :]                  # (sb, n, cn)
        p12 = outer * inv_z[:, :, None]                            # mul, not div
        mi = jnp.sum(jnp.sum(p12 * jnp.log(p12 / (outer + eps) + eps), axis=2),
                     axis=1, keepdims=True)                        # (sb, 1)
        hneg = jnp.sum(jnp.sum(p12 * jnp.log(p12 + eps), axis=2),
                       axis=1, keepdims=True)                      # (sb, 1)
        return mi, hneg

    def chunk_contrib(b0):
        p1c = p1_ref[pl.ds(b0, sb), :].astype(jnp.float32)
        p2c = p2_ref[pl.ds(b0, sb), :].astype(jnp.float32)
        # Separable per-row normalizer: sum_ij p1_i p2_j = (sum_i p1)(sum_j p2).
        s1 = jnp.sum(p1c, axis=1, keepdims=True)
        s2 = jnp.sum(p2c, axis=1, keepdims=True)
        inv_z = 1.0 / (s1 * s2)                                    # sb divides only

        if n_cols == 1:
            mi, hneg = mi_h_block(p1c, p2c, inv_z)
        else:
            # Column-block the outer product so peak live VMEM is O(sb*n*cn)
            # even for large N. Static unroll -> static lane offsets.
            mi = jnp.zeros((sb, 1), jnp.float32)
            hneg = jnp.zeros((sb, 1), jnp.float32)
            for j in range(n_cols):
                p2b = p2_ref[pl.ds(b0, sb), pl.ds(j * cn, cn)].astype(jnp.float32)
                mi_p, h_p = mi_h_block(p1c, p2b, inv_z)
                mi = mi + mi_p
                hneg = hneg + h_p

        # In-kernel per-row weight folds the 1/B mean and masks padded rows
        # (no streamed weight input).
        rows = t * tb + b0 + lax.broadcasted_iota(jnp.int32, (sb, 1), 0)
        w = jnp.where(rows < b, inv_b, jnp.float32(0.0))
        h = -hneg
        return jnp.sum(w * (1.0 - mi / h))

    if n_chunks == 1:
        tile_sum = chunk_contrib(0)
    else:
        def body(c, acc):
            return acc + chunk_contrib(pl.multiple_of(c * sb, sb))
        tile_sum = lax.fori_loop(0, n_chunks, body, jnp.float32(0.0),
                                 unroll=True)

    # Lane-dense per-tile partial (no shared accumulator), so the batch grid
    # axis is "parallel"; the tiny vector of partials is summed outside.
    out_ref[...] = tile_sum * jnp.ones((1, 128), jnp.float32)


def mutual_information_loss(p1, p2):
    """p1, p2: (B, N) float probability rows. Returns scalar float32 loss."""
    assert p1.shape == p2.shape and p1.ndim == 2
    b, n = p1.shape

    tb, sb, cn = _choose_tiles(b, n)
    b_pad = _round_up(b, tb)
    num_tiles = b_pad // tb

    p1 = p1.astype(jnp.float32)
    p2 = p2.astype(jnp.float32)
    if b_pad != b:
        # Benign uniform padding rows keep all intermediate math finite; their
        # contribution is zeroed by the in-kernel row mask.
        pad = jnp.full((b_pad - b, n), 1.0 / n, dtype=jnp.float32)
        p1 = jnp.concatenate([p1, pad], axis=0)
        p2 = jnp.concatenate([p2, pad], axis=0)

    kernel = functools.partial(_mi_loss_kernel, tb=tb, sb=sb, cn=cn, b=b)

    partials = pl.pallas_call(
        kernel,
        out_shape=jax.ShapeDtypeStruct((1, num_tiles * 128), jnp.float32),
        grid=(num_tiles,),
        in_specs=[
            pl.BlockSpec((tb, n), lambda t: (t, 0)),
            pl.BlockSpec((tb, n), lambda t: (t, 0)),
        ],
        out_specs=pl.BlockSpec((1, 128), lambda t: (0, t)),
        compiler_params=pltpu.CompilerParams(
            dimension_semantics=("parallel",),          # per-tile outputs -> no race
            vmem_limit_bytes=40 * 1024 * 1024,          # fits v7x's 64 MiB VMEM
        ),
        cost_estimate=pl.CostEstimate(
            flops=8 * b_pad * n * n,
            transcendentals=3 * b_pad * n * n,
            bytes_accessed=2 * b_pad * n * 4 + num_tiles * 128 * 4,
        ),
    )(p1, p2)

    # Each tile broadcast its partial across its 128-lane slot; take lane 0.
    return jnp.sum(partials.reshape(num_tiles, 128)[:, 0])


def _reference(p1, p2):
    """Pure-JAX reference mirroring the PyTorch forward exactly."""
    eps = jnp.finfo(p1.dtype).eps
    p12 = jnp.einsum("bi,bj->bij", p1, p2)
    p12 = p12 / jnp.sum(p12.reshape(p12.shape[0], -1), axis=-1)[:, None, None]
    product_p = jnp.einsum("bi,bj->bij", p1, p2) + eps
    mi = jnp.sum(p12 * jnp.log(p12 / product_p + eps), axis=(1, 2))
    h = -jnp.sum(p12 * jnp.log(p12 + eps), axis=(1, 2))
    return jnp.mean(1.0 - mi / h)


if __name__ == "__main__":
    key = jax.random.PRNGKey(0)

    # (B, N) cases exercising: tiny single-tile (2), padded single-tile (12, 40),
    # multi-tile + unrolled chunk loop + masked padding (160), and the
    # column-blocked path for wider rows (8, 384).
    cases = [(2, 128), (12, 128), (40, 128), (160, 128), (8, 384)]
    for B, N in cases:
        key, k1, k2 = jax.random.split(key, 3)
        p1 = jax.nn.softmax(jax.random.normal(k1, (B, N), dtype=jnp.float32), axis=-1)
        p2 = jax.nn.softmax(jax.random.normal(k2, (B, N), dtype=jnp.float32), axis=-1)

        loss = jax.block_until_ready(mutual_information_loss(p1, p2))
        ref = jax.block_until_ready(_reference(p1, p2))

        assert jnp.isfinite(loss), f"non-finite loss at B={B}, N={N}"
        assert jnp.allclose(loss, ref, rtol=1e-5, atol=1e-6), (B, N, loss, ref)

    print("KERNEL_OK")
</pallas_src>

<mosaic_0001>
module attributes {stable_mosaic.version = 11 : i64} {
  func.func @_mi_loss_kernel(%arg0: i32, %arg1: memref<2x128xf32, #tpu.memory_space<vmem>>, %arg2: memref<2x128xf32, #tpu.memory_space<vmem>>, %arg3: memref<1x128xf32, #tpu.memory_space<vmem>>) attributes {dimension_semantics = [#tpu.dimension_semantics<parallel>], iteration_bounds = array<i64: 1>, scalar_prefetch = 0 : i64, scratch_operands = 0 : i64, tpu.core_type = #tpu.core_type<tc>, window_params = [{transform_indices = @transform_0, window_bounds = array<i64: 2, 128>}, {transform_indices = @transform_1, window_bounds = array<i64: 2, 128>}, {transform_indices = @transform_2, window_bounds = array<i64: 1, 128>}]} {
    %c0 = arith.constant 0 : index
    %c0_0 = arith.constant 0 : index
    %0 = vector.load %arg1[%c0, %c0_0] : memref<2x128xf32, #tpu.memory_space<vmem>>, vector<2x128xf32>
    %c0_1 = arith.constant 0 : index
    %c0_2 = arith.constant 0 : index
    %1 = vector.load %arg2[%c0_1, %c0_2] : memref<2x128xf32, #tpu.memory_space<vmem>>, vector<2x128xf32>
    %cst = arith.constant dense<0.000000e+00> : vector<2xf32>
    %2 = vector.multi_reduction <add>, %0, %cst [1] : vector<2x128xf32> to vector<2xf32>
    %3 = vector.shape_cast %2 : vector<2xf32> to vector<2x1xf32>
    %cst_3 = arith.constant dense<0.000000e+00> : vector<2xf32>
    %4 = vector.multi_reduction <add>, %1, %cst_3 [1] : vector<2x128xf32> to vector<2xf32>
    %5 = vector.shape_cast %4 : vector<2xf32> to vector<2x1xf32>
    %6 = arith.mulf %3, %5 : vector<2x1xf32>
    %cst_4 = arith.constant 1.000000e+00 : f32
    %7 = vector.broadcast %cst_4 : f32 to vector<2x1xf32>
    %8 = arith.divf %7, %6 : vector<2x1xf32>
    %9 = vector.shape_cast %0 : vector<2x128xf32> to vector<2x128x1xf32>
    %10 = vector.shape_cast %1 : vector<2x128xf32> to vector<2x1x128xf32>
    %11 = vector.broadcast %9 : vector<2x128x1xf32> to vector<2x128x128xf32>
    %12 = vector.broadcast %10 : vector<2x1x128xf32> to vector<2x128x128xf32>
    %13 = arith.mulf %11, %12 : vector<2x128x128xf32>
    %14 = vector.shape_cast %8 : vector<2x1xf32> to vector<2x1x1xf32>
    %15 = vector.broadcast %14 : vector<2x1x1xf32> to vector<2x128x128xf32>
    %16 = arith.mulf %13, %15 : vector<2x128x128xf32>
    %cst_5 = arith.constant 1.1920929E-7 : f32
    %17 = vector.broadcast %cst_5 : f32 to vector<2x128x128xf32>
    %18 = arith.addf %13, %17 : vector<2x128x128xf32>
    %19 = arith.divf %16, %18 : vector<2x128x128xf32>
    %cst_6 = arith.constant 1.1920929E-7 : f32
    %20 = vector.broadcast %cst_6 : f32 to vector<2x128x128xf32>
    %21 = arith.addf %19, %20 : vector<2x128x128xf32>
    %22 = math.log %21 : vector<2x128x128xf32>
    %23 = arith.mulf %16, %22 : vector<2x128x128xf32>
    %cst_7 = arith.constant dense<0.000000e+00> : vector<2x128xf32>
    %24 = vector.multi_reduction <add>, %23, %cst_7 [2] : vector<2x128x128xf32> to vector<2x128xf32>
    %cst_8 = arith.constant dense<0.000000e+00> : vector<2xf32>
    %25 = vector.multi_reduction <add>, %24, %cst_8 [1] : vector<2x128xf32> to vector<2xf32>
    %26 = vector.shape_cast %25 : vector<2xf32> to vector<2x1xf32>
    %cst_9 = arith.constant 1.1920929E-7 : f32
    %27 = vector.broadcast %cst_9 : f32 to vector<2x128x128xf32>
    %28 = arith.addf %16, %27 : vector<2x128x128xf32>
    %29 = math.log %28 : vector<2x128x128xf32>
    %30 = arith.mulf %16, %29 : vector<2x128x128xf32>
    %cst_10 = arith.constant dense<0.000000e+00> : vector<2x128xf32>
    %31 = vector.multi_reduction <add>, %30, %cst_10 [2] : vector<2x128x128xf32> to vector<2x128xf32>
    %cst_11 = arith.constant dense<0.000000e+00> : vector<2xf32>
    %32 = vector.multi_reduction <add>, %31, %cst_11 [1] : vector<2x128xf32> to vector<2xf32>
    %33 = vector.shape_cast %32 : vector<2xf32> to vector<2x1xf32>
    %c2_i32 = arith.constant 2 : i32
    %34 = arith.muli %arg0, %c2_i32 : i32
    %c0_i32 = arith.constant 0 : i32
    %35 = arith.addi %34, %c0_i32 : i32
    %36 = tpu.iota {dimensions = array<i32: 0>} : vector<2x1xi32>
    %37 = vector.broadcast %35 : i32 to vector<2x1xi32>
    %38 = arith.addi %37, %36 : vector<2x1xi32>
    %c2_i32_12 = arith.constant 2 : i32
    %39 = vector.broadcast %c2_i32_12 : i32 to vector<2x1xi32>
    %40 = arith.cmpi slt, %38, %39 : vector<2x1xi32>
    %cst_13 = arith.constant 5.000000e-01 : f32
    %cst_14 = arith.constant 0.000000e+00 : f32
    %41 = vector.broadcast %cst_13 : f32 to vector<2x1xf32>
    %42 = vector.broadcast %cst_14 : f32 to vector<2x1xf32>
    %43 = arith.select %40, %41, %42 : vector<2x1xi1>, vector<2x1xf32>
    %cst_15 = arith.constant 0.000000e+00 : f32
    %44 = vector.broadcast %cst_15 : f32 to vector<2x1xf32>
    %45 = arith.subf %44, %33 : vector<2x1xf32>
    %46 = arith.divf %26, %45 : vector<2x1xf32>
    %cst_16 = arith.constant 1.000000e+00 : f32
    %47 = vector.broadcast %cst_16 : f32 to vector<2x1xf32>
    %48 = arith.subf %47, %46 : vector<2x1xf32>
    %49 = arith.mulf %43, %48 : vector<2x1xf32>
    %50 = vector.shape_cast %49 : vector<2x1xf32> to vector<1x2x1xf32>
    %cst_17 = arith.constant dense<0.000000e+00> : vector<1xf32>
    %51 = vector.multi_reduction <add>, %50, %cst_17 [1, 2] : vector<1x2x1xf32> to vector<1xf32>
    %52 = vector.shape_cast %51 : vector<1xf32> to vector<1x1x1xf32>
    %53 = vector.extract %52[0, 0, 0] : f32 from vector<1x1x1xf32>
    %cst_18 = arith.constant 1.000000e+00 : f32
    %54 = vector.broadcast %cst_18 : f32 to vector<1x128xf32>
    %55 = vector.broadcast %53 : f32 to vector<1x128xf32>
    %56 = arith.mulf %55, %54 : vector<1x128xf32>
    %c0_19 = arith.constant 0 : index
    %c0_20 = arith.constant 0 : index
    %57 = vector.load %arg3[%c0_19, %c0_20] : memref<1x128xf32, #tpu.memory_space<vmem>>, vector<1x128xf32>
    tpu.vector_store %arg3[%c0_19, %c0_20], %56 {strides = array<i32>} : memref<1x128xf32, #tpu.memory_space<vmem>>, vector<1x128xf32>,
    return
  }
  func.func @transform_0(%arg0: i32) -> (i32, i32) {
    %c0_i32 = arith.constant 0 : i32
    %c0_i32_0 = arith.constant 0 : i32
    return %arg0, %c0_i32 : i32, i32
  }
  func.func @transform_1(%arg0: i32) -> (i32, i32) {
    %c0_i32 = arith.constant 0 : i32
    %c0_i32_0 = arith.constant 0 : i32
    return %arg0, %c0_i32 : i32, i32
  }
  func.func @transform_2(%arg0: i32) -> (i32, i32) {
    %c0_i32 = arith.constant 0 : i32
    %c0_i32_0 = arith.constant 0 : i32
    return %c0_i32, %arg0 : i32, i32
  }
}

</mosaic_0001>

<llo_original>
// kernel: tpu_custom_call.1
$region0: #{tpu_custom_call.1}
  #allocation0 [shape = 'u32[]', space=smem, size = 0x4, offset = 0x4, fixed_abs, tag = 'smem constant byte address 0x4 - core index']
  #allocation1 [shape = 'u32[144,128]{1,0:T(1,128)}', space=vmem, size = 0x12000, scoped, tag = 'internal scratch']
  %s0 = inlined_call_operand.hbm [shape: f32[2,128], index: 0, kind: input, shape index: {}]
  %s1 = inlined_call_operand.hbm [shape: f32[2,128], index: 1, kind: input, shape index: {}]
  %s2 = inlined_call_operand.hbm [shape: f32[1,128], index: 2, kind: output, shape index: {}]
  %s3 = sld [smem:[#allocation0]]
  $region26: #{tpu_custom_call.1} parent=0
    _
  %s5 = ssub.s32 1, %s3
  %s6 = scalar_select 0, %s5, %s3
  $region1: #{tpu_custom_call.1} parent=0
    #allocation2 [shape = 'u8[1024]{0}', space=vmem, size = 0x400, scoped, tag = 'input window, operand 0, single buffered']
    #allocation3 [shape = 's32[1]{0}', space=sflag, size = 0x4, scoped, tag = 'scoped memory for tpu_custom_call.1']
    #allocation4 [shape = 's32[1]{0}', space=sflag, size = 0x4, scoped, tag = 'scoped memory for tpu_custom_call.1']
    #allocation5 [shape = 'u8[1024]{0}', space=vmem, size = 0x400, scoped, tag = 'input window, operand 1, single buffered']
    #allocation6 [shape = 's32[1]{0}', space=sflag, size = 0x4, scoped, tag = 'scoped memory for tpu_custom_call.1']
    #allocation7 [shape = 'u8[512]{0}', space=vmem, size = 0x400, scoped, tag = 'output window, operand 0, single buffered']
    %7 = vsyncpa [#allocation3], 0
    %8 = vsyncpa [#allocation6], 0
    %9 = vsyncpa [#allocation4], 0
    // Predicated region
    $region2: #{tpu_custom_call.1} parent=1 // pred_check
      _
    $region3: #{tpu_custom_call.1} parent=1 // pred_check_branch
      %11 = sbr.rel (0) target = $region5
    $region4: #{tpu_custom_call.1} parent=1 // pred_region
      %s13 = ssub.s32 32, 32
      %14 = vsyncadd [#allocation3], %s13
      %s16 = sshll.u32 [#allocation2], 4
      %s17 = int_to_ptr.vmem [resolvable:$true] %s16
      %19 = dma.hbm_to_vmem [thread:$0]  %s0, 32, %s17, [#allocation3]
    $region5: #{tpu_custom_call.1} parent=1 // pred_fallthru
      _
    // Predicated region
    $region6: #{tpu_custom_call.1} parent=1 // pred_check
      _
    $region7: #{tpu_custom_call.1} parent=1 // pred_check_branch
      %21 = sbr.rel (0) target = $region9
    $region8: #{tpu_custom_call.1} parent=1 // pred_region
      %s23 = ssub.s32 32, 32
      %24 = vsyncadd [#allocation6], %s23
      %s26 = sshll.u32 [#allocation5], 4
      %s27 = int_to_ptr.vmem [resolvable:$true] %s26
      %29 = dma.hbm_to_vmem [thread:$0]  %s1, 32, %s27, [#allocation6]
    $region9: #{tpu_custom_call.1} parent=1 // pred_fallthru
      _
    // Predicated region
    $region10: #{tpu_custom_call.1} parent=1 // pred_check
      _
    $region11: #{tpu_custom_call.1} parent=1 // pred_check_branch
      %31 = sbr.rel (0) target = $region13
    $region12: #{tpu_custom_call.1} parent=1 // pred_region
      %32 = dma.done [#allocation3], 32
    $region13: #{tpu_custom_call.1} parent=1 // pred_fallthru
      _
    // Predicated region
    $region14: #{tpu_custom_call.1} parent=1 // pred_check
      _
    $region15: #{tpu_custom_call.1} parent=1 // pred_check_branch
      %34 = sbr.rel (0) target = $region17
    $region16: #{tpu_custom_call.1} parent=1 // pred_region
      %35 = dma.done [#allocation6], 32
    $region17: #{tpu_custom_call.1} parent=1 // pred_fallthru
      _
    %v36 = vld [vmem:[#allocation2] sm:$0x3]
    %v37 = vld [vmem:[#allocation5] sm:$0x3]
    %vm38 = vcmask 1041408
    %v39 = vsel %vm38, %v36, 0.0
    %40 = vadd.xlane.f32.xlu0 %v39
    %v41 = vpop.xlane.xlu0 %40
    %v42 = vsel %vm38, %v37, 0.0
    %43 = vadd.xlane.f32.xlu0 %v42
    %v44 = vpop.xlane.xlu0 %43
    %v45 = vmul.f32 %v41, %v44
    %v46 = vrcp.pop %v45
    %v47 = vmul.f32 1.0, %v46
    %v48 = vlaneseq
    %v49 = vshrl.u32 %v48, 7
    %v50 = vsub.s32 0, %v49
    %v51 = vrot.slane %v36, %v50
    %53 = vbcast.lane.b32.xlu0 %v51, 256
    %v54 = vpop.permute.xlu0 %53
    %s56 = sor.u32 256, 8
    %57 = vbcast.lane.b32.xlu0 %v51, %s56
    %v58 = vpop.permute.xlu0 %57
    %s60 = sor.u32 256, 16
    %61 = vbcast.lane.b32.xlu0 %v51, %s60
    %v62 = vpop.permute.xlu0 %61
    %s64 = sor.u32 256, 24
    %65 = vbcast.lane.b32.xlu0 %v51, %s64
    %v66 = vpop.permute.xlu0 %65
    %s68 = sor.u32 256, 32
    %69 = vbcast.lane.b32.xlu0 %v51, %s68
    %v70 = vpop.permute.xlu0 %69
    %s72 = sor.u32 256, 40
    %73 = vbcast.lane.b32.xlu0 %v51, %s72
    %v74 = vpop.permute.xlu0 %73
    %s76 = sor.u32 256, 48
    %77 = vbcast.lane.b32.xlu0 %v51, %s76
    %v78 = vpop.permute.xlu0 %77
    %s80 = sor.u32 256, 56
    %81 = vbcast.lane.b32.xlu0 %v51, %s80
    %v82 = vpop.permute.xlu0 %81
    %s84 = sor.u32 256, 64
    %85 = vbcast.lane.b32.xlu0 %v51, %s84
    %v86 = vpop.permute.xlu0 %85
    %s88 = sor.u32 256, 72
    %89 = vbcast.lane.b32.xlu0 %v51, %s88
    %v90 = vpop.permute.xlu0 %89
    %s92 = sor.u32 256, 80
    %93 = vbcast.lane.b32.xlu0 %v51, %s92
    %v94 = vpop.permute.xlu0 %93
    %s96 = sor.u32 256, 88
    %97 = vbcast.lane.b32.xlu0 %v51, %s96
    %v98 = vpop.permute.xlu0 %97
    %s100 = sor.u32 256, 96
    %101 = vbcast.lane.b32.xlu0 %v51, %s100
    %v102 = vpop.permute.xlu0 %101
    %s104 = sor.u32 256, 104
    %105 = vbcast.lane.b32.xlu0 %v51, %s104
    %v106 = vpop.permute.xlu0 %105
    %s108 = sor.u32 256, 112
    %109 = vbcast.lane.b32.xlu0 %v51, %s108
    %v110 = vpop.permute.xlu0 %109
    %s112 = sor.u32 256, 120
    %113 = vbcast.lane.b32.xlu0 %v51, %s112
    %v114 = vpop.permute.xlu0 %113
    %v115 = vlaneseq
    %v116 = vshrl.u32 %v115, 7
    %v117 = vsub.s32 1, %v116
    %v118 = vrot.slane %v36, %v117
    %120 = vbcast.lane.b32.xlu0 %v118, 256
    %v121 = vpop.permute.xlu0 %120
    %s123 = sor.u32 256, 8
    %124 = vbcast.lane.b32.xlu0 %v118, %s123
    %v125 = vpop.permute.xlu0 %124
    %s127 = sor.u32 256, 16
    %128 = vbcast.lane.b32.xlu0 %v118, %s127
    %v129 = vpop.permute.xlu0 %128
    %s131 = sor.u32 256, 24
    %132 = vbcast.lane.b32.xlu0 %v118, %s131
    %v133 = vpop.permute.xlu0 %132
    %s135 = sor.u32 256, 32
    %136 = vbcast.lane.b32.xlu0 %v118, %s135
    %v137 = vpop.permute.xlu0 %136
    %s139 = sor.u32 256, 40
    %140 = vbcast.lane.b32.xlu0 %v118, %s139
    %v141 = vpop.permute.xlu0 %140
    %s143 = sor.u32 256, 48
    %144 = vbcast.lane.b32.xlu0 %v118, %s143
    %v145 = vpop.permute.xlu0 %144
    %s147 = sor.u32 256, 56
    %148 = vbcast.lane.b32.xlu0 %v118, %s147
    %v149 = vpop.permute.xlu0 %148
    %s151 = sor.u32 256, 64
    %152 = vbcast.lane.b32.xlu0 %v118, %s151
    %v153 = vpop.permute.xlu0 %152
    %s155 = sor.u32 256, 72
    %156 = vbcast.lane.b32.xlu0 %v118, %s155
    %v157 = vpop.permute.xlu0 %156
    %s159 = sor.u32 256, 80
    %160 = vbcast.lane.b32.xlu0 %v118, %s159
    %v161 = vpop.permute.xlu0 %160
    %s163 = sor.u32 256, 88
    %164 = vbcast.lane.b32.xlu0 %v118, %s163
    %v165 = vpop.permute.xlu0 %164
    %s167 = sor.u32 256, 96
    %168 = vbcast.lane.b32.xlu0 %v118, %s167
    %v169 = vpop.permute.xlu0 %168
    %s171 = sor.u32 256, 104
    %172 = vbcast.lane.b32.xlu0 %v118, %s171
    %v173 = vpop.permute.xlu0 %172
    %s175 = sor.u32 256, 112
    %176 = vbcast.lane.b32.xlu0 %v118, %s175
    %v177 = vpop.permute.xlu0 %176
    %s179 = sor.u32 256, 120
    %180 = vbcast.lane.b32.xlu0 %v118, %s179
    %v181 = vpop.permute.xlu0 %180
    %v184 = vunpack.c.l.s4 1966171168
    %v185 = vunpack.c.0.s8 %v184
    %v186 = vlaneseq
    %v187 = vshrl.u32 %v186, 7
    %v188 = vsub.s32 %v185, %v187
    %v189 = vrot.slane %v37, %v188
    %v190 = vcombine.high %v189, %v189
    %v192 = vunpack.c.l.s4 1966171168
    %v193 = vunpack.c.0.s8 %v192
    %v194 = vlaneseq
    %v195 = vshrl.u32 %v194, 7
    %v196 = vsub.s32 %v193, %v195
    %v197 = vrot.slane %v189, %v196
    %v199 = vunpack.c.l.s4 1966171168
    %v200 = vunpack.c.0.s8 %v199
    %v201 = vlaneseq
    %v202 = vshrl.u32 %v201, 7
    %v203 = vsub.s32 %v200, %v202
    %v204 = vrot.slane %v190, %v203
    %v205 = vlaneseq
    %v206 = vshrl.u32 %v205, 7
    %v207 = vsub.s32 0, %v206
    %v208 = vrot.slane %v197, %v207
    %v209 = vlaneseq
    %v210 = vshrl.u32 %v209, 7
    %v211 = vsub.s32 0, %v210
    %v212 = vrot.slane %v204, %v211
    %v215 = vmul.f32 %v54, %v208
    %v216 = vmul.f32 %v58, %v208
    %v217 = vmul.f32 %v62, %v208
    %v218 = vmul.f32 %v66, %v208
    %v219 = vmul.f32 %v70, %v208
    %v220 = vmul.f32 %v74, %v208
    %v221 = vmul.f32 %v78, %v208
    %v222 = vmul.f32 %v82, %v208
    %v223 = vmul.f32 %v86, %v208
    %v224 = vmul.f32 %v90, %v208
    %v225 = vmul.f32 %v94, %v208
    %v226 = vmul.f32 %v98, %v208
    %v227 = vmul.f32 %v102, %v208
    %v228 = vmul.f32 %v106, %v208
    %v229 = vmul.f32 %v110, %v208
    %v230 = vmul.f32 %v114, %v208
    %v231 = vmul.f32 %v121, %v212
    %v232 = vmul.f32 %v125, %v212
    %v233 = vmul.f32 %v129, %v212
    %v234 = vmul.f32 %v133, %v212
    %v235 = vmul.f32 %v137, %v212
    %v236 = vmul.f32 %v141, %v212
    %v237 = vmul.f32 %v145, %v212
    %v238 = vmul.f32 %v149, %v212
    %v239 = vmul.f32 %v153, %v212
    %v240 = vmul.f32 %v157, %v212
    %v241 = vmul.f32 %v161, %v212
    %v242 = vmul.f32 %v165, %v212
    %v243 = vmul.f32 %v169, %v212
    %v244 = vmul.f32 %v173, %v212
    %v245 = vmul.f32 %v177, %v212
    %v246 = vmul.f32 %v181, %v212
    %v248 = vlaneseq
    %v249 = vshrl.u32 %v248, 7
    %v250 = vsub.s32 0, %v249
    %v251 = vrot.slane %v47, %v250
    %v252 = vlaneseq
    %v253 = vshrl.u32 %v252, 7
    %v254 = vsub.s32 1, %v253
    %v255 = vrot.slane %v47, %v254
    %v258 = vmul.f32 %v215, %v251
    %v259 = vmul.f32 %v216, %v251
    %v260 = vmul.f32 %v217, %v251
    %v261 = vmul.f32 %v218, %v251
    %v262 = vmul.f32 %v219, %v251
    %v263 = vmul.f32 %v220, %v251
    %v264 = vmul.f32 %v221, %v251
    %v265 = vmul.f32 %v222, %v251
    %v266 = vmul.f32 %v223, %v251
    %v267 = vmul.f32 %v224, %v251
    %v268 = vmul.f32 %v225, %v251
    %v269 = vmul.f32 %v226, %v251
    %v270 = vmul.f32 %v227, %v251
    %v271 = vmul.f32 %v228, %v251
    %v272 = vmul.f32 %v229, %v251
    %v273 = vmul.f32 %v230, %v251
    %v274 = vmul.f32 %v231, %v255
    %v275 = vmul.f32 %v232, %v255
    %v276 = vmul.f32 %v233, %v255
    %v277 = vmul.f32 %v234, %v255
    %v278 = vmul.f32 %v235, %v255
    %v279 = vmul.f32 %v236, %v255
    %v280 = vmul.f32 %v237, %v255
    %v281 = vmul.f32 %v238, %v255
    %v282 = vmul.f32 %v239, %v255
    %v283 = vmul.f32 %v240, %v255
    %v284 = vmul.f32 %v241, %v255
    %v285 = vmul.f32 %v242, %v255
    %v286 = vmul.f32 %v243, %v255
    %v287 = vmul.f32 %v244, %v255
    %v288 = vmul.f32 %v245, %v255
    %v289 = vmul.f32 %v246, %v255
    %v290 = vadd.f32 %v215, 1.1920929e-07
    %v291 = vadd.f32 %v216, 1.1920929e-07
    %v292 = vadd.f32 %v217, 1.1920929e-07
    %v293 = vadd.f32 %v218, 1.1920929e-07
    %v294 = vadd.f32 %v219, 1.1920929e-07
    %v295 = vadd.f32 %v220, 1.1920929e-07
    %v296 = vadd.f32 %v221, 1.1920929e-07
    %v297 = vadd.f32 %v222, 1.1920929e-07
    %v298 = vadd.f32 %v223, 1.1920929e-07
    %v299 = vadd.f32 %v224, 1.1920929e-07
    %v300 = vadd.f32 %v225, 1.1920929e-07
    %v301 = vadd.f32 %v226, 1.1920929e-07
    %v302 = vadd.f32 %v227, 1.1920929e-07
    %v303 = vadd.f32 %v228, 1.1920929e-07
    %v304 = vadd.f32 %v229, 1.1920929e-07
    %v305 = vadd.f32 %v230, 1.1920929e-07
    %v306 = vadd.f32 %v231, 1.1920929e-07
    %v307 = vadd.f32 %v232, 1.1920929e-07
    %v308 = vadd.f32 %v233, 1.1920929e-07
    %v309 = vadd.f32 %v234, 1.1920929e-07
    %v310 = vadd.f32 %v235, 1.1920929e-07
    %v311 = vadd.f32 %v236, 1.1920929e-07
    %v312 = vadd.f32 %v237, 1.1920929e-07
    %v313 = vadd.f32 %v238, 1.1920929e-07
    %v314 = vadd.f32 %v239, 1.1920929e-07
    %v315 = vadd.f32 %v240, 1.1920929e-07
    %v316 = vadd.f32 %v241, 1.1920929e-07
    %v317 = vadd.f32 %v242, 1.1920929e-07
    %v318 = vadd.f32 %v243, 1.1920929e-07
    %v319 = vadd.f32 %v244, 1.1920929e-07
    %v320 = vadd.f32 %v245, 1.1920929e-07
    %v321 = vadd.f32 %v246, 1.1920929e-07
    %v322 = vrcp.pop %v290
    %v323 = vmul.f32 %v258, %v322
    %v324 = vrcp.pop %v291
    %v325 = vmul.f32 %v259, %v324
    %v326 = vrcp.pop %v292
    %v327 = vmul.f32 %v260, %v326
    %v328 = vrcp.pop %v293
    %v329 = vmul.f32 %v261, %v328
    %v330 = vrcp.pop %v294
    %v331 = vmul.f32 %v262, %v330
    %v332 = vrcp.pop %v295
    %v333 = vmul.f32 %v263, %v332
    %v334 = vrcp.pop %v296
    %v335 = vmul.f32 %v264, %v334
    %v336 = vrcp.pop %v297
    %v337 = vmul.f32 %v265, %v336
    %v338 = vrcp.pop %v298
    %v339 = vmul.f32 %v266, %v338
    %v340 = vrcp.pop %v299
    %v341 = vmul.f32 %v267, %v340
    %v342 = vrcp.pop %v300
    %v343 = vmul.f32 %v268, %v342
    %v344 = vrcp.pop %v301
    %v345 = vmul.f32 %v269, %v344
    %v346 = vrcp.pop %v302
    %v347 = vmul.f32 %v270, %v346
    %v348 = vrcp.pop %v303
    %v349 = vmul.f32 %v271, %v348
    %v350 = vrcp.pop %v304
    %v351 = vmul.f32 %v272, %v350
    %v352 = vrcp.pop %v305
    %v353 = vmul.f32 %v273, %v352
    %v354 = vrcp.pop %v306
    %v355 = vmul.f32 %v274, %v354
    %v356 = vrcp.pop %v307
    %v357 = vmul.f32 %v275, %v356
    %v358 = vrcp.pop %v308
    %v359 = vmul.f32 %v276, %v358
    %v360 = vrcp.pop %v309
    %v361 = vmul.f32 %v277, %v360
    %v362 = vrcp.pop %v310
    %v363 = vmul.f32 %v278, %v362
    %v364 = vrcp.pop %v311
    %v365 = vmul.f32 %v279, %v364
    %v366 = vrcp.pop %v312
    %v367 = vmul.f32 %v280, %v366
    %v368 = vrcp.pop %v313
    %v369 = vmul.f32 %v281, %v368
    %v370 = vrcp.pop %v314
    %v371 = vmul.f32 %v282, %v370
    %v372 = vrcp.pop %v315
    %v373 = vmul.f32 %v283, %v372
    %v374 = vrcp.pop %v316
    %v375 = vmul.f32 %v284, %v374
    %v376 = vrcp.pop %v317
    %v377 = vmul.f32 %v285, %v376
    %v378 = vrcp.pop %v318
    %v379 = vmul.f32 %v286, %v378
    %v380 = vrcp.pop %v319
    %v381 = vmul.f32 %v287, %v380
    %v382 = vrcp.pop %v320
    %v383 = vmul.f32 %v288, %v382
    %v384 = vrcp.pop %v321
    %v385 = vmul.f32 %v289, %v384
    %v386 = vadd.f32 %v323, 1.1920929e-07
    %v387 = vadd.f32 %v325, 1.1920929e-07
    %v388 = vadd.f32 %v327, 1.1920929e-07
    %v389 = vadd.f32 %v329, 1.1920929e-07
    %v390 = vadd.f32 %v331, 1.1920929e-07
    %v391 = vadd.f32 %v333, 1.1920929e-07
    %v392 = vadd.f32 %v335, 1.1920929e-07
    %v393 = vadd.f32 %v337, 1.1920929e-07
    %v394 = vadd.f32 %v339, 1.1920929e-07
    %v395 = vadd.f32 %v341, 1.1920929e-07
    %v396 = vadd.f32 %v343, 1.1920929e-07
    %v397 = vadd.f32 %v345, 1.1920929e-07
    %v398 = vadd.f32 %v347, 1.1920929e-07
    %v399 = vadd.f32 %v349, 1.1920929e-07
    %v400 = vadd.f32 %v351, 1.1920929e-07
    %v401 = vadd.f32 %v353, 1.1920929e-07
    %v402 = vadd.f32 %v355, 1.1920929e-07
    %v403 = vadd.f32 %v357, 1.1920929e-07
    %v404 = vadd.f32 %v359, 1.1920929e-07
    %v405 = vadd.f32 %v361, 1.1920929e-07
    %v406 = vadd.f32 %v363, 1.1920929e-07
    %v407 = vadd.f32 %v365, 1.1920929e-07
    %v408 = vadd.f32 %v367, 1.1920929e-07
    %v409 = vadd.f32 %v369, 1.1920929e-07
    %v410 = vadd.f32 %v371, 1.1920929e-07
    %v411 = vadd.f32 %v373, 1.1920929e-07
    %v412 = vadd.f32 %v375, 1.1920929e-07
    %v413 = vadd.f32 %v377, 1.1920929e-07
    %v414 = vadd.f32 %v379, 1.1920929e-07
    %v415 = vadd.f32 %v381, 1.1920929e-07
    %v416 = vadd.f32 %v383, 1.1920929e-07
    %v417 = vadd.f32 %v385, 1.1920929e-07
    %v418 = vlog2.pop %v386
    %v419 = vmul.f32 %v418, 0.6931472
    %v420 = vlog2.pop %v387
    %v421 = vmul.f32 %v420, 0.6931472
    %v422 = vlog2.pop %v388
    %v423 = vmul.f32 %v422, 0.6931472
    %v424 = vlog2.pop %v389
    %v425 = vmul.f32 %v424, 0.6931472
    %v426 = vlog2.pop %v390
    %v427 = vmul.f32 %v426, 0.6931472
    %v428 = vlog2.pop %v391
    %v429 = vmul.f32 %v428, 0.6931472
    %v430 = vlog2.pop %v392
    %v431 = vmul.f32 %v430, 0.6931472
    %v432 = vlog2.pop %v393
    %v433 = vmul.f32 %v432, 0.6931472
    %v434 = vlog2.pop %v394
    %v435 = vmul.f32 %v434, 0.6931472
    %v436 = vlog2.pop %v395
    %v437 = vmul.f32 %v436, 0.6931472
    %v438 = vlog2.pop %v396
    %v439 = vmul.f32 %v438, 0.6931472
    %v440 = vlog2.pop %v397
    %v441 = vmul.f32 %v440, 0.6931472
    %v442 = vlog2.pop %v398
    %v443 = vmul.f32 %v442, 0.6931472
    %v444 = vlog2.pop %v399
    %v445 = vmul.f32 %v444, 0.6931472
    %v446 = vlog2.pop %v400
    %v447 = vmul.f32 %v446, 0.6931472
    %v448 = vlog2.pop %v401
    %v449 = vmul.f32 %v448, 0.6931472
    %v450 = vlog2.pop %v402
    %v451 = vmul.f32 %v450, 0.6931472
    %v452 = vlog2.pop %v403
    %v453 = vmul.f32 %v452, 0.6931472
    %v454 = vlog2.pop %v404
    %v455 = vmul.f32 %v454, 0.6931472
    %v456 = vlog2.pop %v405
    %v457 = vmul.f32 %v456, 0.6931472
    %v458 = vlog2.pop %v406
    %v459 = vmul.f32 %v458, 0.6931472
    %v460 = vlog2.pop %v407
    %v461 = vmul.f32 %v460, 0.6931472
    %v462 = vlog2.pop %v408
    %v463 = vmul.f32 %v462, 0.6931472
    %v464 = vlog2.pop %v409
    %v465 = vmul.f32 %v464, 0.6931472
    %v466 = vlog2.pop %v410
    %v467 = vmul.f32 %v466, 0.6931472
    %v468 = vlog2.pop %v411
    %v469 = vmul.f32 %v468, 0.6931472
    %v470 = vlog2.pop %v412
    %v471 = vmul.f32 %v470, 0.6931472
    %v472 = vlog2.pop %v413
    %v473 = vmul.f32 %v472, 0.6931472
    %v474 = vlog2.pop %v414
    %v475 = vmul.f32 %v474, 0.6931472
    %v476 = vlog2.pop %v415
    %v477 = vmul.f32 %v476, 0.6931472
    %v478 = vlog2.pop %v416
    %v479 = vmul.f32 %v478, 0.6931472
    %v480 = vlog2.pop %v417
    %v481 = vmul.f32 %v480, 0.6931472
    %v482 = vmul.f32 %v258, %v419
    %v483 = vmul.f32 %v259, %v421
    %v484 = vmul.f32 %v260, %v423
    %v485 = vmul.f32 %v261, %v425
    %v486 = vmul.f32 %v262, %v427
    %v487 = vmul.f32 %v263, %v429
    %v488 = vmul.f32 %v264, %v431
    %v489 = vmul.f32 %v265, %v433
    %v490 = vmul.f32 %v266, %v435
    %v491 = vmul.f32 %v267, %v437
    %v492 = vmul.f32 %v268, %v439
    %v493 = vmul.f32 %v269, %v441
    %v494 = vmul.f32 %v270, %v443
    %v495 = vmul.f32 %v271, %v445
    %v496 = vmul.f32 %v272, %v447
    %v497 = vmul.f32 %v273, %v449
    %v498 = vmul.f32 %v274, %v451
    %v499 = vmul.f32 %v275, %v453
    %v500 = vmul.f32 %v276, %v455
    %v501 = vmul.f32 %v277, %v457
    %v502 = vmul.f32 %v278, %v459
    %v503 = vmul.f32 %v279, %v461
    %v504 = vmul.f32 %v280, %v463
    %v505 = vmul.f32 %v281, %v465
    %v506 = vmul.f32 %v282, %v467
    %v507 = vmul.f32 %v283, %v469
    %v508 = vmul.f32 %v284, %v471
    %v509 = vmul.f32 %v285, %v473
    %v510 = vmul.f32 %v286, %v475
    %v511 = vmul.f32 %v287, %v477
    %v512 = vmul.f32 %v288, %v479
    %v513 = vmul.f32 %v289, %v481
    %514 = vadd.xlane.f32.xlu0 %v482
    %v515 = vpop.xlane.xlu0 %514
    %516 = vadd.xlane.f32.xlu0 %v483
    %v517 = vpop.xlane.xlu0 %516
    %518 = vadd.xlane.f32.xlu0 %v484
    %v519 = vpop.xlane.xlu0 %518
    %520 = vadd.xlane.f32.xlu0 %v485
    %v521 = vpop.xlane.xlu0 %520
    %522 = vadd.xlane.f32.xlu0 %v486
    %v523 = vpop.xlane.xlu0 %522
    %524 = vadd.xlane.f32.xlu0 %v487
    %v525 = vpop.xlane.xlu0 %524
    %526 = vadd.xlane.f32.xlu0 %v488
    %v527 = vpop.xlane.xlu0 %526
    %528 = vadd.xlane.f32.xlu0 %v489
    %v529 = vpop.xlane.xlu0 %528
    %530 = vadd.xlane.f32.xlu0 %v490
    %v531 = vpop.xlane.xlu0 %530
    %532 = vadd.xlane.f32.xlu0 %v491
    %v533 = vpop.xlane.xlu0 %532
    %534 = vadd.xlane.f32.xlu0 %v492
    %v535 = vpop.xlane.xlu0 %534
    %536 = vadd.xlane.f32.xlu0 %v493
    %v537 = vpop.xlane.xlu0 %536
    %538 = vadd.xlane.f32.xlu0 %v494
    %v539 = vpop.xlane.xlu0 %538
    %540 = vadd.xlane.f32.xlu0 %v495
    %v541 = vpop.xlane.xlu0 %540
    %542 = vadd.xlane.f32.xlu0 %v496
    %v543 = vpop.xlane.xlu0 %542
    %544 = vadd.xlane.f32.xlu0 %v497
    %v545 = vpop.xlane.xlu0 %544
    %546 = vadd.xlane.f32.xlu0 %v498
    %v547 = vpop.xlane.xlu0 %546
    %548 = vadd.xlane.f32.xlu0 %v499
    %v549 = vpop.xlane.xlu0 %548
    %550 = vadd.xlane.f32.xlu0 %v500
    %v551 = vpop.xlane.xlu0 %550
    %552 = vadd.xlane.f32.xlu0 %v501
    %v553 = vpop.xlane.xlu0 %552
    %554 = vadd.xlane.f32.xlu0 %v502
    %v555 = vpop.xlane.xlu0 %554
    %556 = vadd.xlane.f32.xlu0 %v503
    %v557 = vpop.xlane.xlu0 %556
    %558 = vadd.xlane.f32.xlu0 %v504
    %v559 = vpop.xlane.xlu0 %558
    %560 = vadd.xlane.f32.xlu0 %v505
    %v561 = vpop.xlane.xlu0 %560
    %562 = vadd.xlane.f32.xlu0 %v506
    %v563 = vpop.xlane.xlu0 %562
    %564 = vadd.xlane.f32.xlu0 %v507
    %v565 = vpop.xlane.xlu0 %564
    %566 = vadd.xlane.f32.xlu0 %v508
    %v567 = vpop.xlane.xlu0 %566
    %568 = vadd.xlane.f32.xlu0 %v509
    %v569 = vpop.xlane.xlu0 %568
    %570 = vadd.xlane.f32.xlu0 %v510
    %v571 = vpop.xlane.xlu0 %570
    %572 = vadd.xlane.f32.xlu0 %v511
    %v573 = vpop.xlane.xlu0 %572
    %574 = vadd.xlane.f32.xlu0 %v512
    %v575 = vpop.xlane.xlu0 %574
    %576 = vadd.xlane.f32.xlu0 %v513
    %v577 = vpop.xlane.xlu0 %576
    %v610 = vlaneseq
    %v611 = vand.u32 %v610, 127
    %v612 = vlaneseq
    %v613 = vshrl.u32 %v612, 7
    %v614 = vsub.s32 %v611, %v613
    %v615 = vrot.slane %v515, %v614
    %v616 = vadd.s32 %v611, 4294967288
    %v617 = vlaneseq
    %v618 = vshrl.u32 %v617, 7
    %v619 = vsub.s32 %v616, %v618
    %v620 = vrot.slane %v517, %v619
    %vm621 = vcmask 130112
    %v622 = vsel %vm621, %v620, %v615
    %v623 = vadd.s32 %v611, 4294967280
    %v624 = vlaneseq
    %v625 = vshrl.u32 %v624, 7
    %v626 = vsub.s32 %v623, %v625
    %v627 = vrot.slane %v519, %v626
    %vm628 = vcmask 195712
    %v629 = vsel %vm628, %v627, %v622
    %v630 = vadd.s32 %v611, 4294967272
    %v631 = vlaneseq
    %v632 = vshrl.u32 %v631, 7
    %v633 = vsub.s32 %v630, %v632
    %v634 = vrot.slane %v521, %v633
    %vm635 = vcmask 261312
    %v636 = vsel %vm635, %v634, %v629
    %v637 = vadd.s32 %v611, 4294967264
    %v638 = vlaneseq
    %v639 = vshrl.u32 %v638, 7
    %v640 = vsub.s32 %v637, %v639
    %v641 = vrot.slane %v523, %v640
    %vm642 = vcmask 326912
    %v643 = vsel %vm642, %v641, %v636
    %v644 = vadd.s32 %v611, 4294967256
    %v645 = vlaneseq
    %v646 = vshrl.u32 %v645, 7
    %v647 = vsub.s32 %v644, %v646
    %v648 = vrot.slane %v525, %v647
    %vm649 = vcmask 392512
    %v650 = vsel %vm649, %v648, %v643
    %v651 = vadd.s32 %v611, 4294967248
    %v652 = vlaneseq
    %v653 = vshrl.u32 %v652, 7
    %v654 = vsub.s32 %v651, %v653
    %v655 = vrot.slane %v527, %v654
    %vm656 = vcmask 458112
    %v657 = vsel %vm656, %v655, %v650
    %v658 = vadd.s32 %v611, 4294967240
    %v659 = vlaneseq
    %v660 = vshrl.u32 %v659, 7
    %v661 = vsub.s32 %v658, %v660
    %v662 = vrot.slane %v529, %v661
    %vm663 = vcmask 523712
    %v664 = vsel %vm663, %v662, %v657
    %v665 = vadd.s32 %v611, 4294967232
    %v666 = vlaneseq
    %v667 = vshrl.u32 %v666, 7
    %v668 = vsub.s32 %v665, %v667
    %v669 = vrot.slane %v531, %v668
    %vm670 = vcmask 589312
    %v671 = vsel %vm670, %v669, %v664
    %v672 = vadd.s32 %v611, 4294967224
    %v673 = vlaneseq
    %v674 = vshrl.u32 %v673, 7
    %v675 = vsub.s32 %v672, %v674
    %v676 = vrot.slane %v533, %v675
    %vm677 = vcmask 654912
    %v678 = vsel %vm677, %v676, %v671
    %v679 = vadd.s32 %v611, 4294967216
    %v680 = vlaneseq
    %v681 = vshrl.u32 %v680, 7
    %v682 = vsub.s32 %v679, %v681
    %v683 = vrot.slane %v535, %v682
    %vm684 = vcmask 720512
    %v685 = vsel %vm684, %v683, %v678
    %v686 = vadd.s32 %v611, 4294967208
    %v687 = vlaneseq
    %v688 = vshrl.u32 %v687, 7
    %v689 = vsub.s32 %v686, %v688
    %v690 = vrot.slane %v537, %v689
    %vm691 = vcmask 786112
    %v692 = vsel %vm691, %v690, %v685
    %v693 = vadd.s32 %v611, 4294967200
    %v694 = vlaneseq
    %v695 = vshrl.u32 %v694, 7
    %v696 = vsub.s32 %v693, %v695
    %v697 = vrot.slane %v539, %v696
    %vm698 = vcmask 851712
    %v699 = vsel %vm698, %v697, %v692
    %v700 = vadd.s32 %v611, 4294967192
    %v701 = vlaneseq
    %v702 = vshrl.u32 %v701, 7
    %v703 = vsub.s32 %v700, %v702
    %v704 = vrot.slane %v541, %v703
    %vm705 = vcmask 917312
    %v706 = vsel %vm705, %v704, %v699
    %v707 = vadd.s32 %v611, 4294967184
    %v708 = vlaneseq
    %v709 = vshrl.u32 %v708, 7
    %v710 = vsub.s32 %v707, %v709
    %v711 = vrot.slane %v543, %v710
    %vm712 = vcmask 982912
    %v713 = vsel %vm712, %v711, %v706
    %v714 = vadd.s32 %v611, 4294967176
    %v715 = vlaneseq
    %v716 = vshrl.u32 %v715, 7
    %v717 = vsub.s32 %v714, %v716
    %v718 = vrot.slane %v545, %v717
    %vm719 = vcmask 1048512
    %v720 = vsel %vm719, %v718, %v713
    %v721 = vlaneseq
    %v722 = vshrl.u32 %v721, 7
    %v723 = vsub.s32 %v611, %v722
    %v724 = vrot.slane %v547, %v723
    %v725 = vlaneseq
    %v726 = vshrl.u32 %v725, 7
    %v727 = vsub.s32 %v616, %v726
    %v728 = vrot.slane %v549, %v727
    %v729 = vsel %vm621, %v728, %v724
    %v730 = vlaneseq
    %v731 = vshrl.u32 %v730, 7
    %v732 = vsub.s32 %v623, %v731
    %v733 = vrot.slane %v551, %v732
    %v734 = vsel %vm628, %v733, %v729
    %v735 = vlaneseq
    %v736 = vshrl.u32 %v735, 7
    %v737 = vsub.s32 %v630, %v736
    %v738 = vrot.slane %v553, %v737
    %v739 = vsel %vm635, %v738, %v734
    %v740 = vlaneseq
    %v741 = vshrl.u32 %v740, 7
    %v742 = vsub.s32 %v637, %v741
    %v743 = vrot.slane %v555, %v742
    %v744 = vsel %vm642, %v743, %v739
    %v745 = vlaneseq
    %v746 = vshrl.u32 %v745, 7
    %v747 = vsub.s32 %v644, %v746
    %v748 = vrot.slane %v557, %v747
    %v749 = vsel %vm649, %v748, %v744
    %v750 = vlaneseq
    %v751 = vshrl.u32 %v750, 7
    %v752 = vsub.s32 %v651, %v751
    %v753 = vrot.slane %v559, %v752
    %v754 = vsel %vm656, %v753, %v749
    %v755 = vlaneseq
    %v756 = vshrl.u32 %v755, 7
    %v757 = vsub.s32 %v658, %v756
    %v758 = vrot.slane %v561, %v757
    %v759 = vsel %vm663, %v758, %v754
    %v760 = vlaneseq
    %v761 = vshrl.u32 %v760, 7
    %v762 = vsub.s32 %v665, %v761
    %v763 = vrot.slane %v563, %v762
    %v764 = vsel %vm670, %v763, %v759
    %v765 = vlaneseq
    %v766 = vshrl.u32 %v765, 7
    %v767 = vsub.s32 %v672, %v766
    %v768 = vrot.slane %v565, %v767
    %v769 = vsel %vm677, %v768, %v764
    %v770 = vlaneseq
    %v771 = vshrl.u32 %v770, 7
    %v772 = vsub.s32 %v679, %v771
    %v773 = vrot.slane %v567, %v772
    %v774 = vsel %vm684, %v773, %v769
    %v775 = vlaneseq
    %v776 = vshrl.u32 %v775, 7
    %v777 = vsub.s32 %v686, %v776
    %v778 = vrot.slane %v569, %v777
    %v779 = vsel %vm691, %v778, %v774
    %v780 = vlaneseq
    %v781 = vshrl.u32 %v780, 7
    %v782 = vsub.s32 %v693, %v781
    %v783 = vrot.slane %v571, %v782
    %v784 = vsel %vm698, %v783, %v779
    %v785 = vlaneseq
    %v786 = vshrl.u32 %v785, 7
    %v787 = vsub.s32 %v700, %v786
    %v788 = vrot.slane %v573, %v787
    %v789 = vsel %vm705, %v788, %v784
    %v790 = vlaneseq
    %v791 = vshrl.u32 %v790, 7
    %v792 = vsub.s32 %v707, %v791
    %v793 = vrot.slane %v575, %v792
    %v794 = vsel %vm712, %v793, %v789
    %v795 = vlaneseq
    %v796 = vshrl.u32 %v795, 7
    %v797 = vsub.s32 %v714, %v796
    %v798 = vrot.slane %v577, %v797
    %v799 = vsel %vm719, %v798, %v794
    %vm800 = vcmask 1041409
    %v801 = vsel %vm800, %v799, %v720
    %v803 = vsel %vm38, %v801, 0.0
    %804 = vadd.xlane.f32.xlu0 %v803
    %v805 = vpop.xlane.xlu0 %804
    %v806 = vadd.f32 %v258, 1.1920929e-07
    %v807 = vadd.f32 %v259, 1.1920929e-07
    %v808 = vadd.f32 %v260, 1.1920929e-07
    %v809 = vadd.f32 %v261, 1.1920929e-07
    %v810 = vadd.f32 %v262, 1.1920929e-07
    %v811 = vadd.f32 %v263, 1.1920929e-07
    %v812 = vadd.f32 %v264, 1.1920929e-07
    %v813 = vadd.f32 %v265, 1.1920929e-07
    %v814 = vadd.f32 %v266, 1.1920929e-07
    %v815 = vadd.f32 %v267, 1.1920929e-07
    %v816 = vadd.f32 %v268, 1.1920929e-07
    %v817 = vadd.f32 %v269, 1.1920929e-07
    %v818 = vadd.f32 %v270, 1.1920929e-07
    %v819 = vadd.f32 %v271, 1.1920929e-07
    %v820 = vadd.f32 %v272, 1.1920929e-07
    %v821 = vadd.f32 %v273, 1.1920929e-07
    %v822 = vadd.f32 %v274, 1.1920929e-07
    %v823 = vadd.f32 %v275, 1.1920929e-07
    %v824 = vadd.f32 %v276, 1.1920929e-07
    %v825 = vadd.f32 %v277, 1.1920929e-07
    %v826 = vadd.f32 %v278, 1.1920929e-07
    %v827 = vadd.f32 %v279, 1.1920929e-07
    %v828 = vadd.f32 %v280, 1.1920929e-07
    %v829 = vadd.f32 %v281, 1.1920929e-07
    %v830 = vadd.f32 %v282, 1.1920929e-07
    %v831 = vadd.f32 %v283, 1.1920929e-07
    %v832 = vadd.f32 %v284, 1.1920929e-07
    %v833 = vadd.f32 %v285, 1.1920929e-07
    %v834 = vadd.f32 %v286, 1.1920929e-07
    %v835 = vadd.f32 %v287, 1.1920929e-07
    %v836 = vadd.f32 %v288, 1.1920929e-07
    %v837 = vadd.f32 %v289, 1.1920929e-07
    %v838 = vlog2.pop %v806
    %v839 = vmul.f32 %v838, 0.6931472
    %v840 = vlog2.pop %v807
    %v841 = vmul.f32 %v840, 0.6931472
    %v842 = vlog2.pop %v808
    %v843 = vmul.f32 %v842, 0.6931472
    %v844 = vlog2.pop %v809
    %v845 = vmul.f32 %v844, 0.6931472
    %v846 = vlog2.pop %v810
    %v847 = vmul.f32 %v846, 0.6931472
    %v848 = vlog2.pop %v811
    %v849 = vmul.f32 %v848, 0.6931472
    %v850 = vlog2.pop %v812
    %v851 = vmul.f32 %v850, 0.6931472
    %v852 = vlog2.pop %v813
    %v853 = vmul.f32 %v852, 0.6931472
    %v854 = vlog2.pop %v814
    %v855 = vmul.f32 %v854, 0.6931472
    %v856 = vlog2.pop %v815
    %v857 = vmul.f32 %v856, 0.6931472
    %v858 = vlog2.pop %v816
    %v859 = vmul.f32 %v858, 0.6931472
    %v860 = vlog2.pop %v817
    %v861 = vmul.f32 %v860, 0.6931472
    %v862 = vlog2.pop %v818
    %v863 = vmul.f32 %v862, 0.6931472
    %v864 = vlog2.pop %v819
    %v865 = vmul.f32 %v864, 0.6931472
    %v866 = vlog2.pop %v820
    %v867 = vmul.f32 %v866, 0.6931472
    %v868 = vlog2.pop %v821
    %v869 = vmul.f32 %v868, 0.6931472
    %v870 = vlog2.pop %v822
    %v871 = vmul.f32 %v870, 0.6931472
    %v872 = vlog2.pop %v823
    %v873 = vmul.f32 %v872, 0.6931472
    %v874 = vlog2.pop %v824
    %v875 = vmul.f32 %v874, 0.6931472
    %v876 = vlog2.pop %v825
    %v877 = vmul.f32 %v876, 0.6931472
    %v878 = vlog2.pop %v826
    %v879 = vmul.f32 %v878, 0.6931472
    %v880 = vlog2.pop %v827
    %v881 = vmul.f32 %v880, 0.6931472
    %v882 = vlog2.pop %v828
    %v883 = vmul.f32 %v882, 0.6931472
    %v884 = vlog2.pop %v829
    %v885 = vmul.f32 %v884, 0.6931472
    %v886 = vlog2.pop %v830
    %v887 = vmul.f32 %v886, 0.6931472
    %v888 = vlog2.pop %v831
    %v889 = vmul.f32 %v888, 0.6931472
    %v890 = vlog2.pop %v832
    %v891 = vmul.f32 %v890, 0.6931472
    %v892 = vlog2.pop %v833
    %v893 = vmul.f32 %v892, 0.6931472
    %v894 = vlog2.pop %v834
    %v895 = vmul.f32 %v894, 0.6931472
    %v896 = vlog2.pop %v835
    %v897 = vmul.f32 %v896, 0.6931472
    %v898 = vlog2.pop %v836
    %v899 = vmul.f32 %v898, 0.6931472
    %v900 = vlog2.pop %v837
    %v901 = vmul.f32 %v900, 0.6931472
    %v902 = vmul.f32 %v258, %v839
    %v903 = vmul.f32 %v259, %v841
    %v904 = vmul.f32 %v260, %v843
    %v905 = vmul.f32 %v261, %v845
    %v906 = vmul.f32 %v262, %v847
    %v907 = vmul.f32 %v263, %v849
    %v908 = vmul.f32 %v264, %v851
    %v909 = vmul.f32 %v265, %v853
    %v910 = vmul.f32 %v266, %v855
    %v911 = vmul.f32 %v267, %v857
    %v912 = vmul.f32 %v268, %v859
    %v913 = vmul.f32 %v269, %v861
    %v914 = vmul.f32 %v270, %v863
    %v915 = vmul.f32 %v271, %v865
    %v916 = vmul.f32 %v272, %v867
    %v917 = vmul.f32 %v273, %v869
    %v918 = vmul.f32 %v274, %v871
    %v919 = vmul.f32 %v275, %v873
    %v920 = vmul.f32 %v276, %v875
    %v921 = vmul.f32 %v277, %v877
    %v922 = vmul.f32 %v278, %v879
    %v923 = vmul.f32 %v279, %v881
    %v924 = vmul.f32 %v280, %v883
    %v925 = vmul.f32 %v281, %v885
    %v926 = vmul.f32 %v282, %v887
    %v927 = vmul.f32 %v283, %v889
    %v928 = vmul.f32 %v284, %v891
    %v929 = vmul.f32 %v285, %v893
    %v930 = vmul.f32 %v286, %v895
    %v931 = vmul.f32 %v287, %v897
    %v932 = vmul.f32 %v288, %v899
    %v933 = vmul.f32 %v289, %v901
    %934 = vadd.xlane.f32.xlu0 %v902
    %v935 = vpop.xlane.xlu0 %934
    %936 = vadd.xlane.f32.xlu0 %v903
    %v937 = vpop.xlane.xlu0 %936
    %938 = vadd.xlane.f32.xlu0 %v904
    %v939 = vpop.xlane.xlu0 %938
    %940 = vadd.xlane.f32.xlu0 %v905
    %v941 = vpop.xlane.xlu0 %940
    %942 = vadd.xlane.f32.xlu0 %v906
    %v943 = vpop.xlane.xlu0 %942
    %944 = vadd.xlane.f32.xlu0 %v907
    %v945 = vpop.xlane.xlu0 %944
    %946 = vadd.xlane.f32.xlu0 %v908
    %v947 = vpop.xlane.xlu0 %946
    %948 = vadd.xlane.f32.xlu0 %v909
    %v949 = vpop.xlane.xlu0 %948
    %950 = vadd.xlane.f32.xlu0 %v910
    %v951 = vpop.xlane.xlu0 %950
    %952 = vadd.xlane.f32.xlu0 %v911
    %v953 = vpop.xlane.xlu0 %952
    %954 = vadd.xlane.f32.xlu0 %v912
    %v955 = vpop.xlane.xlu0 %954
    %956 = vadd.xlane.f32.xlu0 %v913
    %v957 = vpop.xlane.xlu0 %956
    %958 = vadd.xlane.f32.xlu0 %v914
    %v959 = vpop.xlane.xlu0 %958
    %960 = vadd.xlane.f32.xlu0 %v915
    %v961 = vpop.xlane.xlu0 %960
    %962 = vadd.xlane.f32.xlu0 %v916
    %v963 = vpop.xlane.xlu0 %962
    %964 = vadd.xlane.f32.xlu0 %v917
    %v965 = vpop.xlane.xlu0 %964
    %966 = vadd.xlane.f32.xlu0 %v918
    %v967 = vpop.xlane.xlu0 %966
    %968 = vadd.xlane.f32.xlu0 %v919
    %v969 = vpop.xlane.xlu0 %968
    %970 = vadd.xlane.f32.xlu0 %v920
    %v971 = vpop.xlane.xlu0 %970
    %972 = vadd.xlane.f32.xlu0 %v921
    %v973 = vpop.xlane.xlu0 %972
    %974 = vadd.xlane.f32.xlu0 %v922
    %v975 = vpop.xlane.xlu0 %974
    %976 = vadd.xlane.f32.xlu0 %v923
    %v977 = vpop.xlane.xlu0 %976
    %978 = vadd.xlane.f32.xlu0 %v924
    %v979 = vpop.xlane.xlu0 %978
    %980 = vadd.xlane.f32.xlu0 %v925
    %v981 = vpop.xlane.xlu0 %980
    %982 = vadd.xlane.f32.xlu0 %v926
    %v983 = vpop.xlane.xlu0 %982
    %984 = vadd.xlane.f32.xlu0 %v927
    %v985 = vpop.xlane.xlu0 %984
    %986 = vadd.xlane.f32.xlu0 %v928
    %v987 = vpop.xlane.xlu0 %986
    %988 = vadd.xlane.f32.xlu0 %v929
    %v989 = vpop.xlane.xlu0 %988
    %990 = vadd.xlane.f32.xlu0 %v930
    %v991 = vpop.xlane.xlu0 %990
    %992 = vadd.xlane.f32.xlu0 %v931
    %v993 = vpop.xlane.xlu0 %992
    %994 = vadd.xlane.f32.xlu0 %v932
    %v995 = vpop.xlane.xlu0 %994
    %996 = vadd.xlane.f32.xlu0 %v933
    %v997 = vpop.xlane.xlu0 %996
    %v1030 = vlaneseq
    %v1031 = vshrl.u32 %v1030, 7
    %v1032 = vsub.s32 %v611, %v1031
    %v1033 = vrot.slane %v935, %v1032
    %v1034 = vlaneseq
    %v1035 = vshrl.u32 %v1034, 7
    %v1036 = vsub.s32 %v616, %v1035
    %v1037 = vrot.slane %v937, %v1036
    %v1038 = vsel %vm621, %v1037, %v1033
    %v1039 = vlaneseq
    %v1040 = vshrl.u32 %v1039, 7
    %v1041 = vsub.s32 %v623, %v1040
    %v1042 = vrot.slane %v939, %v1041
    %v1043 = vsel %vm628, %v1042, %v1038
    %v1044 = vlaneseq
    %v1045 = vshrl.u32 %v1044, 7
    %v1046 = vsub.s32 %v630, %v1045
    %v1047 = vrot.slane %v941, %v1046
    %v1048 = vsel %vm635, %v1047, %v1043
    %v1049 = vlaneseq
    %v1050 = vshrl.u32 %v1049, 7
    %v1051 = vsub.s32 %v637, %v1050
    %v1052 = vrot.slane %v943, %v1051
    %v1053 = vsel %vm642, %v1052, %v1048
    %v1054 = vlaneseq
    %v1055 = vshrl.u32 %v1054, 7
    %v1056 = vsub.s32 %v644, %v1055
    %v1057 = vrot.slane %v945, %v1056
    %v1058 = vsel %vm649, %v1057, %v1053
    %v1059 = vlaneseq
    %v1060 = vshrl.u32 %v1059, 7
    %v1061 = vsub.s32 %v651, %v1060
    %v1062 = vrot.slane %v947, %v1061
    %v1063 = vsel %vm656, %v1062, %v1058
    %v1064 = vlaneseq
    %v1065 = vshrl.u32 %v1064, 7
    %v1066 = vsub.s32 %v658, %v1065
    %v1067 = vrot.slane %v949, %v1066
    %v1068 = vsel %vm663, %v1067, %v1063
    %v1069 = vlaneseq
    %v1070 = vshrl.u32 %v1069, 7
    %v1071 = vsub.s32 %v665, %v1070
    %v1072 = vrot.slane %v951, %v1071
    %v1073 = vsel %vm670, %v1072, %v1068
    %v1074 = vlaneseq
    %v1075 = vshrl.u32 %v1074, 7
    %v1076 = vsub.s32 %v672, %v1075
    %v1077 = vrot.slane %v953, %v1076
    %v1078 = vsel %vm677, %v1077, %v1073
    %v1079 = vlaneseq
    %v1080 = vshrl.u32 %v1079, 7
    %v1081 = vsub.s32 %v679, %v1080
    %v1082 = vrot.slane %v955, %v1081
    %v1083 = vsel %vm684, %v1082, %v1078
    %v1084 = vlaneseq
    %v1085 = vshrl.u32 %v1084, 7
    %v1086 = vsub.s32 %v686, %v1085
    %v1087 = vrot.slane %v957, %v1086
    %v1088 = vsel %vm691, %v1087, %v1083
    %v1089 = vlaneseq
    %v1090 = vshrl.u32 %v1089, 7
    %v1091 = vsub.s32 %v693, %v1090
    %v1092 = vrot.slane %v959, %v1091
    %v1093 = vsel %vm698, %v1092, %v1088
    %v1094 = vlaneseq
    %v1095 = vshrl.u32 %v1094, 7
    %v1096 = vsub.s32 %v700, %v1095
    %v1097 = vrot.slane %v961, %v1096
    %v1098 = vsel %vm705, %v1097, %v1093
    %v1099 = vlaneseq
    %v1100 = vshrl.u32 %v1099, 7
    %v1101 = vsub.s32 %v707, %v1100
    %v1102 = vrot.slane %v963, %v1101
    %v1103 = vsel %vm712, %v1102, %v1098
    %v1104 = vlaneseq
    %v1105 = vshrl.u32 %v1104, 7
    %v1106 = vsub.s32 %v714, %v1105
    %v1107 = vrot.slane %v965, %v1106
    %v1108 = vsel %vm719, %v1107, %v1103
    %v1109 = vlaneseq
    %v1110 = vshrl.u32 %v1109, 7
    %v1111 = vsub.s32 %v611, %v1110
    %v1112 = vrot.slane %v967, %v1111
    %v1113 = vlaneseq
    %v1114 = vshrl.u32 %v1113, 7
    %v1115 = vsub.s32 %v616, %v1114
    %v1116 = vrot.slane %v969, %v1115
    %v1117 = vsel %vm621, %v1116, %v1112
    %v1118 = vlaneseq
    %v1119 = vshrl.u32 %v1118, 7
    %v1120 = vsub.s32 %v623, %v1119
    %v1121 = vrot.slane %v971, %v1120
    %v1122 = vsel %vm628, %v1121, %v1117
    %v1123 = vlaneseq
    %v1124 = vshrl.u32 %v1123, 7
    %v1125 = vsub.s32 %v630, %v1124
    %v1126 = vrot.slane %v973, %v1125
    %v1127 = vsel %vm635, %v1126, %v1122
    %v1128 = vlaneseq
    %v1129 = vshrl.u32 %v1128, 7
    %v1130 = vsub.s32 %v637, %v1129
    %v1131 = vrot.slane %v975, %v1130
    %v1132 = vsel %vm642, %v1131, %v1127
    %v1133 = vlaneseq
    %v1134 = vshrl.u32 %v1133, 7
    %v1135 = vsub.s32 %v644, %v1134
    %v1136 = vrot.slane %v977, %v1135
    %v1137 = vsel %vm649, %v1136, %v1132
    %v1138 = vlaneseq
    %v1139 = vshrl.u32 %v1138, 7
    %v1140 = vsub.s32 %v651, %v1139
    %v1141 = vrot.slane %v979, %v1140
    %v1142 = vsel %vm656, %v1141, %v1137
    %v1143 = vlaneseq
    %v1144 = vshrl.u32 %v1143, 7
    %v1145 = vsub.s32 %v658, %v1144
    %v1146 = vrot.slane %v981, %v1145
    %v1147 = vsel %vm663, %v1146, %v1142
    %v1148 = vlaneseq
    %v1149 = vshrl.u32 %v1148, 7
    %v1150 = vsub.s32 %v665, %v1149
    %v1151 = vrot.slane %v983, %v1150
    %v1152 = vsel %vm670, %v1151, %v1147
    %v1153 = vlaneseq
    %v1154 = vshrl.u32 %v1153, 7
    %v1155 = vsub.s32 %v672, %v1154
    %v1156 = vrot.slane %v985, %v1155
    %v1157 = vsel %vm677, %v1156, %v1152
    %v1158 = vlaneseq
    %v1159 = vshrl.u32 %v1158, 7
    %v1160 = vsub.s32 %v679, %v1159
    %v1161 = vrot.slane %v987, %v1160
    %v1162 = vsel %vm684, %v1161, %v1157
    %v1163 = vlaneseq
    %v1164 = vshrl.u32 %v1163, 7
    %v1165 = vsub.s32 %v686, %v1164
    %v1166 = vrot.slane %v989, %v1165
    %v1167 = vsel %vm691, %v1166, %v1162
    %v1168 = vlaneseq
    %v1169 = vshrl.u32 %v1168, 7
    %v1170 = vsub.s32 %v693, %v1169
    %v1171 = vrot.slane %v991, %v1170
    %v1172 = vsel %vm698, %v1171, %v1167
    %v1173 = vlaneseq
    %v1174 = vshrl.u32 %v1173, 7
    %v1175 = vsub.s32 %v700, %v1174
    %v1176 = vrot.slane %v993, %v1175
    %v1177 = vsel %vm705, %v1176, %v1172
    %v1178 = vlaneseq
    %v1179 = vshrl.u32 %v1178, 7
    %v1180 = vsub.s32 %v707, %v1179
    %v1181 = vrot.slane %v995, %v1180
    %v1182 = vsel %vm712, %v1181, %v1177
    %v1183 = vlaneseq
    %v1184 = vshrl.u32 %v1183, 7
    %v1185 = vsub.s32 %v714, %v1184
    %v1186 = vrot.slane %v997, %v1185
    %v1187 = vsel %vm719, %v1186, %v1182
    %v1188 = vsel %vm800, %v1187, %v1108
    %v1190 = vsel %vm38, %v1188, 0.0
    %1191 = vadd.xlane.f32.xlu0 %v1190
    %v1192 = vpop.xlane.xlu0 %1191
    %s1193 = smul.u32 0, 2
    %v1194 = vlaneseq
    %v1195 = vshrl.u32 %v1194, 7
    %v1196 = vstv %s1193
    %v1197 = vadd.s32 %v1196, %v1195
    %vm1198 = vcmp.lt.s32.totalorder %v1197, 2
    %v1199 = vsel %vm1198, 0.5, 0.0
    %v1200 = vsub.f32 0.0, %v1192
    %v1201 = vrcp.pop %v1200
    %v1202 = vmul.f32 %v805, %v1201
    %v1203 = vsub.f32 1.0, %v1202
    %v1204 = vmul.f32 %v1199, %v1203
    %vm1205 = vcmask 1024
    %v1206 = vsel %vm1205, %v1204, 0.0
    %1207 = vadd.xlane.f32.xlu0 %v1206
    %v1208 = vpop.xlane.xlu0 %1207
    %v1209 = vrot.slane %v1208, 4
    %v1210 = vadd.f32 %v1208, %v1209
    %v1211 = vrot.slane %v1210, 2
    %v1212 = vadd.f32 %v1210, %v1211
    %v1213 = vrot.slane %v1212, 1
    %v1214 = vadd.f32 %v1212, %v1213
    %s1215 = vtos %v1214
    %v1216 = vstv %s1215
    %1217 = vst [vmem:[#allocation7] sm:$0x1] %v1216
    // Predicated region
    $region18: #{tpu_custom_call.1} parent=1 // pred_check
      _
    $region19: #{tpu_custom_call.1} parent=1 // pred_check_branch
      %1219 = sbr.rel (0) target = $region21
    $region20: #{tpu_custom_call.1} parent=1 // pred_region
      %s1221 = ssub.s32 16, 16
      %1222 = vsyncadd [#allocation4], %s1221
      %s1224 = sshll.u32 [#allocation7], 4
      %s1225 = int_to_ptr.vmem [resolvable:$true] %s1224
      %1227 = dma.vmem_to_hbm [thread:$0]  %s1225, 16, %s2, [#allocation4]
    $region21: #{tpu_custom_call.1} parent=1 // pred_fallthru
      _
    // Predicated region
    $region22: #{tpu_custom_call.1} parent=1 // pred_check
      _
    $region23: #{tpu_custom_call.1} parent=1 // pred_check_branch
      %1229 = sbr.rel (0) target = $region25
    $region24: #{tpu_custom_call.1} parent=1 // pred_region
      %1230 = dma.done [#allocation4], 16
    $region25: #{tpu_custom_call.1} parent=1 // pred_fallthru
      _
    %1231 = vsyncpa [#allocation3], 1
    %1232 = vsyncpa [#allocation6], 1
    %1233 = vsyncpa [#allocation4], 1

</llo_original>
